<compile_context>
chip_gen: v7x
topology: tpu7x:2x2x1
jax: 0.10.0
libtpu: 0.0.40
codegen_flags: <defaults>
</compile_context>

<pallas_src>
import jax
import jax.numpy as jnp
from jax.experimental import pallas as pl
from jax.experimental.pallas import tpu as pltpu


def _round_up(x, m):
    return ((x + m - 1) // m) * m


def _cbce_kernel(logits_ref, target_ref, wtgt_ref, loss_ref):
    # logits_ref: (TN, C) float (any)   target_ref: (TN, 1) int32
    # wtgt_ref:   (TN, 1) f32 = weight[target]      loss_ref: (TN, 1) f32
    x = logits_ref[...].astype(jnp.float32)          # (TN, C) f32 compute
    t = target_ref[...]                              # (TN, 1) int32
    w = wtgt_ref[...]                                # (TN, 1) f32

    tn, c = x.shape

    # numerically-stable log-sum-exp over classes (lane axis)
    m = jnp.max(x, axis=-1, keepdims=True)                               # (TN, 1)
    lse = jnp.log(jnp.sum(jnp.exp(x - m), axis=-1, keepdims=True)) + m   # (TN, 1)

    # one-hot gather of the target logit (VPU mul + XLU reduce)
    cls_ids = jax.lax.broadcasted_iota(jnp.int32, (tn, c), 1)
    onehot = (cls_ids == t).astype(jnp.float32)                          # (TN, C)
    x_tgt = jnp.sum(onehot * x, axis=-1, keepdims=True)                  # (TN, 1)

    # per-sample weighted NLL:  w[y] * (logsumexp(x) - x[y])
    loss_ref[...] = w * (lse - x_tgt)


def _choose_block_n(n, c, itemsize, budget_bytes=16 << 20):
    """Largest multiple-of-8 row tile whose double-buffered logits fit budget."""
    tn = budget_bytes // max(1, 2 * c * itemsize)
    tn = max(8, (tn // 8) * 8)
    tn = min(tn, 1024)                     # keep per-step grid overhead amortized
    tn = min(tn, _round_up(n, 8))          # never bigger than the (padded) batch
    return tn


def cbce_loss(out, target, weight=None):
    """Class-balanced cross entropy, reduction='none'.

    out:    [N, C] float logits (f32 or bf16; bf16 halves HBM traffic)
    target: [N]    int class indices
    weight: [C]    optional per-class weights (defaults to ones)
    returns [N] float32 per-sample losses

    Notes: ignore_index / label_smoothing (PyTorch CrossEntropyLoss extras) are
    not handled — CBCELoss never uses them.
    """
    n, c = out.shape
    target = target.astype(jnp.int32)

    # Hoist the per-class weight gather out of the kernel (trivial [N] gather).
    if weight is None:
        w_tgt = jnp.ones((n,), jnp.float32)
    else:
        w_tgt = weight.astype(jnp.float32)[target]

    itemsize = jnp.dtype(out.dtype).itemsize
    tn = _choose_block_n(n, c, itemsize)
    n_pad = _round_up(n, tn)

    if n_pad != n:
        pad = n_pad - n
        out = jnp.pad(out, ((0, pad), (0, 0)))
        target = jnp.pad(target, (0, pad))          # class 0: always valid
        w_tgt = jnp.pad(w_tgt, (0, pad))            # weight 0 -> padded loss = 0

    target2d = target.reshape(n_pad, 1)
    wtgt2d = w_tgt.reshape(n_pad, 1)

    logits_block_bytes = tn * c * itemsize
    vmem_limit = int(min(48 << 20, max(16 << 20, 3 * logits_block_bytes + (1 << 20))))

    loss = pl.pallas_call(
        _cbce_kernel,
        out_shape=jax.ShapeDtypeStruct((n_pad, 1), jnp.float32),
        grid_spec=pltpu.PrefetchScalarGridSpec(
            num_scalar_prefetch=0,
            grid=(n_pad // tn,),
            in_specs=[
                pl.BlockSpec((tn, c), lambda i: (i, 0)),   # logits tile
                pl.BlockSpec((tn, 1), lambda i: (i, 0)),   # targets
                pl.BlockSpec((tn, 1), lambda i: (i, 0)),   # weight[target]
            ],
            out_specs=pl.BlockSpec((tn, 1), lambda i: (i, 0)),
        ),
        compiler_params=pltpu.CompilerParams(
            dimension_semantics=("parallel",),
            vmem_limit_bytes=vmem_limit,
        ),
    )(out, target2d, wtgt2d)

    return loss[:n, 0]


if __name__ == "__main__":
    key = jax.random.PRNGKey(0)
    k1, k2, k3 = jax.random.split(key, 3)

    # N deliberately NOT a multiple of 8 to exercise the padding path.
    N, C = 10, 32
    logits = jax.random.normal(k1, (N, C), dtype=jnp.float32)
    target = jax.random.randint(k2, (N,), 0, C, dtype=jnp.int32)
    weight = jax.random.uniform(k3, (C,), dtype=jnp.float32, minval=0.5, maxval=1.5)

    # f32 path + reference check
    loss = cbce_loss(logits, target, weight)
    jax.block_until_ready(loss)
    logp = jax.nn.log_softmax(logits, axis=-1)
    ref = -weight[target] * logp[jnp.arange(N), target]
    assert jnp.allclose(loss, ref, atol=1e-5, rtol=1e-5), (loss, ref)

    # unweighted path (weight=None)
    loss_u = cbce_loss(logits, target)
    jax.block_until_ready(loss_u)
    ref_u = -logp[jnp.arange(N), target]
    assert jnp.allclose(loss_u, ref_u, atol=1e-5, rtol=1e-5), (loss_u, ref_u)

    # bf16 logits path (halved HBM read; f32 compute inside the kernel)
    logits_bf16 = logits.astype(jnp.bfloat16)
    loss_bf = cbce_loss(logits_bf16, target, weight)
    jax.block_until_ready(loss_bf)
    logp_bf = jax.nn.log_softmax(logits_bf16.astype(jnp.float32), axis=-1)
    ref_bf = -weight[target] * logp_bf[jnp.arange(N), target]
    assert jnp.allclose(loss_bf, ref_bf, atol=2e-2, rtol=2e-2), (loss_bf, ref_bf)

    print("KERNEL_OK")
</pallas_src>

<mosaic_0001>
module attributes {stable_mosaic.version = 11 : i64} {
  func.func @_cbce_kernel(%arg0: i32, %arg1: memref<16x32xf32, #tpu.memory_space<vmem>>, %arg2: memref<16x1xi32, #tpu.memory_space<vmem>>, %arg3: memref<16x1xf32, #tpu.memory_space<vmem>>, %arg4: memref<16x1xf32, #tpu.memory_space<vmem>>) attributes {dimension_semantics = [#tpu.dimension_semantics<parallel>], iteration_bounds = array<i64: 1>, scalar_prefetch = 0 : i64, scratch_operands = 0 : i64, tpu.core_type = #tpu.core_type<tc>, window_params = [{transform_indices = @transform_0, window_bounds = array<i64: 16, 32>}, {transform_indices = @transform_1, window_bounds = array<i64: 16, 1>}, {transform_indices = @transform_2, window_bounds = array<i64: 16, 1>}, {transform_indices = @transform_3, window_bounds = array<i64: 16, 1>}]} {
    %c0 = arith.constant 0 : index
    %c0_0 = arith.constant 0 : index
    %0 = vector.load %arg1[%c0, %c0_0] : memref<16x32xf32, #tpu.memory_space<vmem>>, vector<16x32xf32>
    %c0_1 = arith.constant 0 : index
    %c0_2 = arith.constant 0 : index
    %1 = vector.load %arg2[%c0_1, %c0_2] : memref<16x1xi32, #tpu.memory_space<vmem>>, vector<16x1xi32>
    %c0_3 = arith.constant 0 : index
    %c0_4 = arith.constant 0 : index
    %2 = vector.load %arg3[%c0_3, %c0_4] : memref<16x1xf32, #tpu.memory_space<vmem>>, vector<16x1xf32>
    %cst = arith.constant dense<0xFF800000> : vector<16xf32>
    %3 = vector.multi_reduction <maximumf>, %0, %cst [1] : vector<16x32xf32> to vector<16xf32>
    %4 = vector.shape_cast %3 : vector<16xf32> to vector<16x1xf32>
    %5 = vector.broadcast %4 : vector<16x1xf32> to vector<16x32xf32>
    %6 = arith.subf %0, %5 : vector<16x32xf32>
    %7 = math.exp %6 : vector<16x32xf32>
    %cst_5 = arith.constant dense<0.000000e+00> : vector<16xf32>
    %8 = vector.multi_reduction <add>, %7, %cst_5 [1] : vector<16x32xf32> to vector<16xf32>
    %9 = vector.shape_cast %8 : vector<16xf32> to vector<16x1xf32>
    %10 = math.log %9 : vector<16x1xf32>
    %11 = arith.addf %10, %4 : vector<16x1xf32>
    %12 = tpu.iota {dimensions = array<i32: 1>} : vector<16x32xi32>
    %13 = vector.broadcast %1 : vector<16x1xi32> to vector<16x32xi32>
    %14 = arith.cmpi eq, %12, %13 : vector<16x32xi32>
    %15 = arith.extui %14 : vector<16x32xi1> to vector<16x32xi32>
    %16 = arith.sitofp %15 : vector<16x32xi32> to vector<16x32xf32>
    %17 = arith.mulf %16, %0 : vector<16x32xf32>
    %cst_6 = arith.constant dense<0.000000e+00> : vector<16xf32>
    %18 = vector.multi_reduction <add>, %17, %cst_6 [1] : vector<16x32xf32> to vector<16xf32>
    %19 = vector.shape_cast %18 : vector<16xf32> to vector<16x1xf32>
    %20 = arith.subf %11, %19 : vector<16x1xf32>
    %21 = arith.mulf %2, %20 : vector<16x1xf32>
    %c0_7 = arith.constant 0 : index
    %c0_8 = arith.constant 0 : index
    %22 = vector.load %arg4[%c0_7, %c0_8] : memref<16x1xf32, #tpu.memory_space<vmem>>, vector<16x1xf32>
    tpu.vector_store %arg4[%c0_7, %c0_8], %21 {strides = array<i32>} : memref<16x1xf32, #tpu.memory_space<vmem>>, vector<16x1xf32>,
    return
  }
  func.func @transform_0(%arg0: i32) -> (i32, i32) {
    %c0_i32 = arith.constant 0 : i32
    %c0_i32_0 = arith.constant 0 : i32
    return %arg0, %c0_i32 : i32, i32
  }
  func.func @transform_1(%arg0: i32) -> (i32, i32) {
    %c0_i32 = arith.constant 0 : i32
    %c0_i32_0 = arith.constant 0 : i32
    return %arg0, %c0_i32 : i32, i32
  }
  func.func @transform_2(%arg0: i32) -> (i32, i32) {
    %c0_i32 = arith.constant 0 : i32
    %c0_i32_0 = arith.constant 0 : i32
    return %arg0, %c0_i32 : i32, i32
  }
  func.func @transform_3(%arg0: i32) -> (i32, i32) {
    %c0_i32 = arith.constant 0 : i32
    %c0_i32_0 = arith.constant 0 : i32
    return %arg0, %c0_i32 : i32, i32
  }
}

</mosaic_0001>

<llo_original>
// kernel: tpu_custom_call.1
$region0: #{tpu_custom_call.1}
  #allocation0 [shape = 'u32[]', space=smem, size = 0x4, offset = 0x4, fixed_abs, tag = 'smem constant byte address 0x4 - core index']
  #allocation1 [shape = 'u32[144,128]{1,0:T(1,128)}', space=vmem, size = 0x12000, scoped, tag = 'internal scratch']
  %s0 = inlined_call_operand.vmem [shape: f32[16,32], index: 0, kind: input, shape index: {}]
  %s1 = inlined_call_operand.vmem [shape: s32[16,1], index: 1, kind: input, shape index: {}]
  %s2 = inlined_call_operand.vmem [shape: f32[16,1], index: 2, kind: input, shape index: {}]
  %s3 = inlined_call_operand.vmem [shape: f32[16,1], index: 3, kind: output, shape index: {}]
  %s4 = sld [smem:[#allocation0]]
  $region22: #{tpu_custom_call.1} parent=0
    _
  %s6 = ssub.s32 1, %s4
  %s7 = scalar_select 0, %s6, %s4
  // Predicated region
  $region2: #{tpu_custom_call.1} parent=0 // pred_check
    _
  $region3: #{tpu_custom_call.1} parent=0 // pred_check_branch
    %9 = sbr.rel (0) target = $region5
  $region4: #{tpu_custom_call.1} parent=0 // pred_region
    _
  $region5: #{tpu_custom_call.1} parent=0 // pred_fallthru
    _
  // Predicated region
  $region6: #{tpu_custom_call.1} parent=0 // pred_check
    _
  $region7: #{tpu_custom_call.1} parent=0 // pred_check_branch
    %11 = sbr.rel (0) target = $region9
  $region8: #{tpu_custom_call.1} parent=0 // pred_region
    _
  $region9: #{tpu_custom_call.1} parent=0 // pred_fallthru
    _
  // Predicated region
  $region10: #{tpu_custom_call.1} parent=0 // pred_check
    _
  $region11: #{tpu_custom_call.1} parent=0 // pred_check_branch
    %13 = sbr.rel (0) target = $region13
  $region12: #{tpu_custom_call.1} parent=0 // pred_region
    _
  $region13: #{tpu_custom_call.1} parent=0 // pred_fallthru
    _
  %v14 = vld [vmem:[%s0] sm:$0xff]
  %v15 = vld [vmem:[%s0 + $0x8] sm:$0xff]
  %v16 = vld [vmem:[%s1] sm:$0xff]
  %v17 = vld [vmem:[%s1 + $0x8] sm:$0xff]
  %v18 = vld [vmem:[%s2] sm:$0xff]
  %v19 = vld [vmem:[%s2 + $0x8] sm:$0xff]
  %vm20 = vcmask 261120
  %v21 = vsel %vm20, %v14, -inf
  %22 = vmax.xlane.f32.xlu0 %v21
  %v23 = vpop.xlane.xlu0 %22
  %v24 = vsel %vm20, %v15, -inf
  %25 = vmax.xlane.f32.xlu0 %v24
  %v26 = vpop.xlane.xlu0 %25
  %v27 = vsub.f32 %v14, %v23
  %v28 = vsub.f32 %v15, %v26
  %v29 = vmul.f32 %v27, 1.442695
  %v30 = vpow.pop %v29
  %v31 = vmul.f32 %v28, 1.442695
  %v32 = vpow.pop %v31
  %v33 = vsel %vm20, %v30, 0.0
  %34 = vadd.xlane.f32.xlu0 %v33
  %v35 = vpop.xlane.xlu0 %34
  %v36 = vsel %vm20, %v32, 0.0
  %37 = vadd.xlane.f32.xlu0 %v36
  %v38 = vpop.xlane.xlu0 %37
  %v39 = vlog2.pop %v35
  %v40 = vmul.f32 %v39, 0.6931472
  %v41 = vlog2.pop %v38
  %v42 = vmul.f32 %v41, 0.6931472
  %v43 = vadd.f32 %v40, %v23
  %v44 = vadd.f32 %v42, %v26
  %v45 = vlaneseq
  %v46 = vand.u32 %v45, 127
  %47 = vset.pattern.permute.xlu0 0
  %48 = vperm.xlu0 %47, %v16
  %v49 = vpop.permute.xlu0 %48
  %50 = vset.pattern.permute.xlu0 0
  %51 = vperm.xlu0 %50, %v17
  %v52 = vpop.permute.xlu0 %51
  %vm53 = vcmp.eq.s32.totalorder %v46, %v49
  %vm54 = vcmp.eq.s32.totalorder %v46, %v52
  %v55 = vsel %vm53, 1, 0
  %v56 = vsel %vm54, 1, 0
  %v57 = vcvt.s32.f32 %v55
  %v58 = vcvt.s32.f32 %v56
  %v59 = vmul.f32 %v57, %v14
  %v60 = vmul.f32 %v58, %v15
  %v61 = vsel %vm20, %v59, 0.0
  %62 = vadd.xlane.f32.xlu0 %v61
  %v63 = vpop.xlane.xlu0 %62
  %v64 = vsel %vm20, %v60, 0.0
  %65 = vadd.xlane.f32.xlu0 %v64
  %v66 = vpop.xlane.xlu0 %65
  %v67 = vsub.f32 %v43, %v63
  %v68 = vsub.f32 %v44, %v66
  %v69 = vmul.f32 %v18, %v67
  %v70 = vmul.f32 %v19, %v68
  %vm71 = vcmask 7168
  %72 = vst.msk [vmem:[%s3] sm:$0xff] %vm71, %v69
  %73 = vst.msk [vmem:[%s3 + $0x8] sm:$0xff] %vm71, %v70
  // Predicated region
  $region14: #{tpu_custom_call.1} parent=0 // pred_check
    _
  $region15: #{tpu_custom_call.1} parent=0 // pred_check_branch
    %75 = sbr.rel (0) target = $region17
  $region16: #{tpu_custom_call.1} parent=0 // pred_region
    _
  $region17: #{tpu_custom_call.1} parent=0 // pred_fallthru
    _
  // Predicated region
  $region18: #{tpu_custom_call.1} parent=0 // pred_check
    _
  $region19: #{tpu_custom_call.1} parent=0 // pred_check_branch
    %77 = sbr.rel (0) target = $region21
  $region20: #{tpu_custom_call.1} parent=0 // pred_region
    _
  $region21: #{tpu_custom_call.1} parent=0 // pred_fallthru
    _

</llo_original>
